<compile_context>
chip_gen: v7x
topology: tpu7x:2x2x1
jax: 0.10.0
libtpu: 0.0.40
codegen_flags: <defaults>
</compile_context>

<pallas_src>
import jax
import jax.numpy as jnp
from jax.experimental import pallas as pl
from jax.experimental.pallas import tpu as pltpu

EPS = 1e-5                       # PyTorch BatchNorm2d default eps
LANE = 128                       # lane / MXU alignment (use 256 on v7x for full 256-wide passes)
MAX_TM = 512                     # rows per grid step; ~85%+ of HBM roofline at 512-row tiles
VMEM_LIMIT = 40 * 1024 * 1024    # explicit scoped-VMEM budget (fits v5e/v6e 128MiB, v7x 64MiB)


def _round_up(x, m):
    return (x + m - 1) // m * m


# ---------------- pass 1: conv matmul + per-tile BN partial sums ----------------
def _conv_stats_kernel(p_ref, w_ref, y_ref, stat_ref):
    # p_ref: (TM, Kp) bf16, w_ref: (Kp, Cp) bf16
    # y_ref: (TM, Cp) f32,  stat_ref: (8, Cp) f32 (row 0 = sum, row 1 = sum of squares)
    y = jnp.dot(p_ref[...], w_ref[...], preferred_element_type=jnp.float32)
    y_ref[...] = y
    s = jnp.sum(y, axis=0, keepdims=True)
    ss = jnp.sum(y * y, axis=0, keepdims=True)
    stat_ref[...] = jnp.concatenate(
        [s, ss, jnp.zeros((6, y.shape[1]), jnp.float32)], axis=0)


# ---------------- pass 2: fused BN-normalize + FiLM + ReLU ----------------
def _affine_relu_kernel(y_ref, a_ref, b_ref, o_ref):
    # y_ref: (TM, Cp) f32; a_ref/b_ref: (1, Cp) per-batch folded BN+FiLM affine (f32 epilogue)
    o_ref[...] = jnp.maximum(y_ref[...] * a_ref[...] + b_ref[...], 0.0).astype(o_ref.dtype)


def block_forward(x, conv_w, conv_b, gamma, beta, scale, shift, *, stride=1, padding=1):
    """x: NCHW f32. conv_w: (Cout, Cin, k, k). scale/shift: (B, Cout). Returns NCHW output."""
    B, Cin, H, W = x.shape
    Cout, _, kh, kw = conv_w.shape
    Ho = (H + 2 * padding - kh) // stride + 1
    Wo = (W + 2 * padding - kw) // stride + 1
    K, HW = Cin * kh * kw, Ho * Wo

    Kp = _round_up(K, LANE)          # contraction dim padded to MXU/lane alignment
    Cp = _round_up(Cout, LANE)       # output channels padded -> lane-dense (unmasked) stores
    TM = min(MAX_TM, _round_up(HW, 8))
    HWp = _round_up(HW, TM)
    nT = HWp // TM

    # ---- glue: im2col patch extraction (plain JAX), bf16 to halve HBM/DMA bytes ----
    # TODO(synk): for large inputs, loop the kh*kw taps inside the kernel (shifted windows)
    # instead of materializing the k*k-inflated im2col tensor in HBM.
    xp = jnp.pad(x, ((0, 0), (0, 0), (padding, padding), (padding, padding)))
    cols = []
    for i in range(kh):
        for j in range(kw):
            cols.append(jax.lax.slice(
                xp, (0, 0, i, j),
                (B, Cin, i + (Ho - 1) * stride + 1, j + (Wo - 1) * stride + 1),
                (1, 1, stride, stride)))                         # (B, Cin, Ho, Wo)
    pat = jnp.stack(cols, axis=2)                                # (B, Cin, k*k, Ho, Wo)
    pat = pat.transpose(0, 3, 4, 1, 2).reshape(B, HW, K)         # (B, HW, Cin*k*k)
    pat = jnp.pad(pat, ((0, 0), (0, HWp - HW), (0, Kp - K))).astype(jnp.bfloat16)

    wf = conv_w.reshape(Cout, K).T                               # (K, Cout), matches patch order
    wf = jnp.pad(wf, ((0, Kp - K), (0, Cp - Cout))).astype(jnp.bfloat16)
    # conv bias intentionally unused: a per-channel constant is exactly removed by the
    # training-mode BatchNorm mean subtraction.
    del conv_b

    cparams = pltpu.CompilerParams(
        dimension_semantics=("parallel", "parallel"),
        vmem_limit_bytes=VMEM_LIMIT)

    # ---- pass 1 ----
    flops1 = 2 * B * HWp * Kp * Cp
    bytes1 = int(pat.size * 2 + wf.size * 2 + B * HWp * Cp * 4 + B * nT * 8 * Cp * 4)
    y, partial = pl.pallas_call(
        _conv_stats_kernel,
        grid=(B, nT),
        in_specs=[
            pl.BlockSpec((None, TM, Kp), lambda b, t: (b, t, 0)),       # patches tile
            pl.BlockSpec((Kp, Cp), lambda b, t: (0, 0)),                # weights (resident)
        ],
        out_specs=[
            pl.BlockSpec((None, TM, Cp), lambda b, t: (b, t, 0)),       # conv output tile
            pl.BlockSpec((None, None, 8, Cp), lambda b, t: (b, t, 0, 0)),  # per-tile partials
        ],
        out_shape=[
            jax.ShapeDtypeStruct((B, HWp, Cp), jnp.float32),
            jax.ShapeDtypeStruct((B, nT, 8, Cp), jnp.float32),
        ],
        compiler_params=cparams,
        cost_estimate=pl.CostEstimate(flops=flops1, transcendentals=0, bytes_accessed=bytes1),
    )(pat, wf)

    # ---- tiny glue: global BN stats + fold BN/FiLM into one per-(batch,channel) affine ----
    count = float(B * HW)                       # padded rows contribute exact zeros to the sums
    s = jnp.sum(partial[:, :, 0, :], axis=(0, 1))
    ss = jnp.sum(partial[:, :, 1, :], axis=(0, 1))
    mean = s / count
    var = ss / count - mean * mean              # E[x^2] - mean^2, f32 accumulation
    inv = jax.lax.rsqrt(var + EPS)
    gamma_p = jnp.pad(gamma, (0, Cp - Cout))
    beta_p = jnp.pad(beta, (0, Cp - Cout))
    scale_p = jnp.pad(scale, ((0, 0), (0, Cp - Cout)))
    shift_p = jnp.pad(shift, ((0, 0), (0, Cp - Cout)))
    a_c = gamma_p * inv
    b_c = beta_p - mean * a_c
    A = (a_c[None, :] * (scale_p + 1.0)).reshape(B, 1, Cp).astype(jnp.float32)
    Bb = (b_c[None, :] * (scale_p + 1.0) + shift_p).reshape(B, 1, Cp).astype(jnp.float32)

    # ---- pass 2: normalize + FiLM + ReLU ----
    # TODO(synk): nn.Dropout(0.1) is identity (eval semantics); training-mode masking would
    # need a pltpu.prng_seed/prng_random_bits path.
    out = pl.pallas_call(
        _affine_relu_kernel,
        grid=(B, nT),
        in_specs=[
            pl.BlockSpec((None, TM, Cp), lambda b, t: (b, t, 0)),
            pl.BlockSpec((None, 1, Cp), lambda b, t: (b, 0, 0)),
            pl.BlockSpec((None, 1, Cp), lambda b, t: (b, 0, 0)),
        ],
        out_specs=pl.BlockSpec((None, TM, Cp), lambda b, t: (b, t, 0)),
        out_shape=jax.ShapeDtypeStruct((B, HWp, Cp), jnp.float32),
        compiler_params=cparams,
        cost_estimate=pl.CostEstimate(flops=2 * B * HWp * Cp, transcendentals=0,
                                      bytes_accessed=int(2 * B * HWp * Cp * 4)),
    )(y, A, Bb)

    # ---- glue: drop padding, back to NCHW for parity with the PyTorch module.
    # (Downstream consumers that accept NHWC can skip this transpose.)
    out = out[:, :HW, :Cout].reshape(B, Ho, Wo, Cout).transpose(0, 3, 1, 2)
    return out


def _reference(x, conv_w, conv_b, gamma, beta, scale, shift, *, stride=1, padding=1):
    y = jax.lax.conv_general_dilated(
        x, conv_w, (stride, stride), [(padding, padding), (padding, padding)],
        dimension_numbers=('NCHW', 'OIHW', 'NCHW'))
    y = y + conv_b[None, :, None, None]
    mean = y.mean(axis=(0, 2, 3), keepdims=True)
    var = ((y - mean) ** 2).mean(axis=(0, 2, 3), keepdims=True)
    y = (y - mean) / jnp.sqrt(var + EPS)
    y = y * gamma[None, :, None, None] + beta[None, :, None, None]
    y = y * (scale[:, :, None, None] + 1.0) + shift[:, :, None, None]
    return jnp.maximum(y, 0.0)


if __name__ == "__main__":
    key = jax.random.PRNGKey(0)
    B, Cin, Cout, H, W, k = 2, 4, 8, 16, 16, 3
    ks = jax.random.split(key, 7)

    x = jax.random.normal(ks[0], (B, Cin, H, W), jnp.float32)
    conv_w = 0.1 * jax.random.normal(ks[1], (Cout, Cin, k, k), jnp.float32)
    conv_b = 0.1 * jax.random.normal(ks[2], (Cout,), jnp.float32)
    gamma = 1.0 + 0.1 * jax.random.normal(ks[3], (Cout,), jnp.float32)
    beta = 0.1 * jax.random.normal(ks[4], (Cout,), jnp.float32)
    scale = 0.5 * jax.random.normal(ks[5], (B, Cout), jnp.float32)
    shift = 0.5 * jax.random.normal(ks[6], (B, Cout), jnp.float32)

    out = block_forward(x, conv_w, conv_b, gamma, beta, scale, shift, stride=1, padding=1)
    out = jax.block_until_ready(out)

    ref = _reference(x, conv_w, conv_b, gamma, beta, scale, shift, stride=1, padding=1)
    assert out.shape == (B, Cout, H, W)
    # bf16 matmul operands (f32 accumulation/epilogue) -> loosened tolerance vs the f32 reference.
    max_err = float(jnp.max(jnp.abs(out - ref)))
    assert jnp.allclose(out, ref, atol=5e-2, rtol=5e-2), max_err

    print("KERNEL_OK")
</pallas_src>

<mosaic_0001>
module attributes {stable_mosaic.version = 11 : i64} {
  func.func @_conv_stats_kernel(%arg0: i32, %arg1: i32, %arg2: memref<1x256x128xbf16, #tpu.memory_space<vmem>>, %arg3: memref<128x128xbf16, #tpu.memory_space<vmem>>, %arg4: memref<1x256x128xf32, #tpu.memory_space<vmem>>, %arg5: memref<1x1x8x128xf32, #tpu.memory_space<vmem>>) attributes {dimension_semantics = [#tpu.dimension_semantics<parallel>, #tpu.dimension_semantics<parallel>], iteration_bounds = array<i64: 2, 1>, scalar_prefetch = 0 : i64, scratch_operands = 0 : i64, tpu.core_type = #tpu.core_type<tc>, window_params = [{transform_indices = @transform_0, window_bounds = array<i64: 1, 256, 128>}, {pipeline_mode = #tpu.pipeline_mode<synchronous>, transform_indices = @transform_1, window_bounds = array<i64: 128, 128>}, {transform_indices = @transform_2, window_bounds = array<i64: 1, 256, 128>}, {transform_indices = @transform_3, window_bounds = array<i64: 1, 1, 8, 128>}]} {
    %c0 = arith.constant 0 : index
    %c0_0 = arith.constant 0 : index
    %c0_1 = arith.constant 0 : index
    %0 = vector.load %arg2[%c0, %c0_0, %c0_1] : memref<1x256x128xbf16, #tpu.memory_space<vmem>>, vector<1x256x128xbf16>
    %1 = vector.shape_cast %0 : vector<1x256x128xbf16> to vector<256x128xbf16>
    %c0_2 = arith.constant 0 : index
    %c0_3 = arith.constant 0 : index
    %2 = vector.load %arg3[%c0_2, %c0_3] : memref<128x128xbf16, #tpu.memory_space<vmem>>, vector<128x128xbf16>
    %cst = arith.constant dense<0.000000e+00> : vector<256x128xf32>
    %3 = tpu.matmul %1, %2, %cst {dimension_numbers = #tpu.dot_dimension_numbers<[1], [0], [0], [1], [0, 0, 1, 1], [], []>} : vector<256x128xbf16>, vector<128x128xbf16>, vector<256x128xf32> -> vector<256x128xf32>
    %c0_4 = arith.constant 0 : index
    %c0_5 = arith.constant 0 : index
    %c0_6 = arith.constant 0 : index
    %4 = vector.load %arg4[%c0_4, %c0_5, %c0_6] : memref<1x256x128xf32, #tpu.memory_space<vmem>>, vector<1x256x128xf32>
    %5 = vector.shape_cast %4 : vector<1x256x128xf32> to vector<256x128xf32>
    %6 = vector.shape_cast %3 : vector<256x128xf32> to vector<1x256x128xf32>
    tpu.vector_store %arg4[%c0_4, %c0_5, %c0_6], %6 {strides = array<i32>} : memref<1x256x128xf32, #tpu.memory_space<vmem>>, vector<1x256x128xf32>,
    %cst_7 = arith.constant dense<0.000000e+00> : vector<128xf32>
    %7 = vector.multi_reduction <add>, %3, %cst_7 [0] : vector<256x128xf32> to vector<128xf32>
    %8 = vector.shape_cast %7 : vector<128xf32> to vector<1x128xf32>
    %9 = arith.mulf %3, %3 : vector<256x128xf32>
    %cst_8 = arith.constant dense<0.000000e+00> : vector<128xf32>
    %10 = vector.multi_reduction <add>, %9, %cst_8 [0] : vector<256x128xf32> to vector<128xf32>
    %11 = vector.shape_cast %10 : vector<128xf32> to vector<1x128xf32>
    %cst_9 = arith.constant 0.000000e+00 : f32
    %12 = vector.broadcast %cst_9 : f32 to vector<6x128xf32>
    %13 = tpu.concatenate %8, %11, %12 in 0 : vector<1x128xf32>, vector<1x128xf32>, vector<6x128xf32> -> vector<8x128xf32>
    %c0_10 = arith.constant 0 : index
    %c0_11 = arith.constant 0 : index
    %c0_12 = arith.constant 0 : index
    %c0_13 = arith.constant 0 : index
    %14 = vector.load %arg5[%c0_10, %c0_11, %c0_12, %c0_13] : memref<1x1x8x128xf32, #tpu.memory_space<vmem>>, vector<1x1x8x128xf32>
    %15 = vector.shape_cast %14 : vector<1x1x8x128xf32> to vector<8x128xf32>
    %16 = vector.shape_cast %13 : vector<8x128xf32> to vector<1x1x8x128xf32>
    tpu.vector_store %arg5[%c0_10, %c0_11, %c0_12, %c0_13], %16 {strides = array<i32>} : memref<1x1x8x128xf32, #tpu.memory_space<vmem>>, vector<1x1x8x128xf32>,
    return
  }
  func.func @transform_0(%arg0: i32, %arg1: i32) -> (i32, i32, i32) {
    %c0_i32 = arith.constant 0 : i32
    %c0_i32_0 = arith.constant 0 : i32
    return %arg0, %arg1, %c0_i32 : i32, i32, i32
  }
  func.func @transform_1(%arg0: i32, %arg1: i32) -> (i32, i32) {
    %c0_i32 = arith.constant 0 : i32
    %c0_i32_0 = arith.constant 0 : i32
    %c0_i32_1 = arith.constant 0 : i32
    return %c0_i32, %c0_i32_0 : i32, i32
  }
  func.func @transform_2(%arg0: i32, %arg1: i32) -> (i32, i32, i32) {
    %c0_i32 = arith.constant 0 : i32
    %c0_i32_0 = arith.constant 0 : i32
    return %arg0, %arg1, %c0_i32 : i32, i32, i32
  }
  func.func @transform_3(%arg0: i32, %arg1: i32) -> (i32, i32, i32, i32) {
    %c0_i32 = arith.constant 0 : i32
    %c0_i32_0 = arith.constant 0 : i32
    %c0_i32_1 = arith.constant 0 : i32
    return %arg0, %arg1, %c0_i32, %c0_i32_0 : i32, i32, i32, i32
  }
}

</mosaic_0001>

<llo_original>
// kernel: tpu_custom_call.1
$region0: #{tpu_custom_call.1}
  #allocation0 [shape = 'u32[]', space=smem, size = 0x4, offset = 0x4, fixed_abs, tag = 'smem constant byte address 0x4 - core index']
  #allocation1 [shape = 'u32[144,128]{1,0:T(1,128)}', space=vmem, size = 0x12000, scoped, tag = 'internal scratch']
  %s0 = inlined_call_operand.hbm [shape: bf16[2,256,128], index: 0, kind: input, shape index: {}]
  %s1 = inlined_call_operand.hbm [shape: bf16[128,128], index: 1, kind: input, shape index: {}]
  %s2 = inlined_call_operand.hbm [shape: f32[2,256,128], index: 2, kind: output, shape index: {0}]
  %s3 = inlined_call_operand.hbm [shape: f32[2,1,8,128], index: 3, kind: output, shape index: {1}]
  %4 = xla_tuple %s2, %s3
  %s5 = sld [smem:[#allocation0]]
  $region57: #{tpu_custom_call.1} parent=0
    _
  %s7 = ssub.s32 1, %s5
  %s8 = scalar_select 0, %s7, %s5
  $region1: #{tpu_custom_call.1} parent=0
    #allocation2 [shape = 'u8[131072]{0}', space=vmem, size = 0x20000, scoped, tag = 'input window, operand 0']
    #allocation3 [shape = 's32[2]{0}', space=sflag, size = 0x8, scoped, tag = 'scoped memory for tpu_custom_call.1']
    #allocation4 [shape = 's32[2]{0}', space=sflag, size = 0x8, scoped, tag = 'scoped memory for tpu_custom_call.1']
    #allocation5 [shape = 'u8[32768]{0}', space=vmem, size = 0x8000, scoped, tag = 'input window, operand 1, single buffered']
    #allocation6 [shape = 's32[1]{0}', space=sflag, size = 0x4, scoped, tag = 'scoped memory for tpu_custom_call.1']
    #allocation7 [shape = 'u8[262144]{0}', space=vmem, size = 0x40000, scoped, tag = 'output window, operand 0']
    #allocation8 [shape = 'u8[8192]{0}', space=vmem, size = 0x2000, scoped, tag = 'output window, operand 1']
    #allocation9 [shape = 's32[2]{0}', space=sflag, size = 0x8, scoped, tag = 'scoped memory for tpu_custom_call.1']
    %9 = vsyncpa [#allocation3], 0
    %s10 = scalar_lea.sflag [#allocation3], 1
    %11 = vsyncpa %s10, 0
    %12 = vsyncpa [#allocation6], 0
    %13 = vsyncpa [#allocation4], 0
    %s14 = scalar_lea.sflag [#allocation4], 1
    %15 = vsyncpa %s14, 0
    %16 = vsyncpa [#allocation9], 0
    %s17 = scalar_lea.sflag [#allocation9], 1
    %18 = vsyncpa %s17, 0
    loop: start=0, step=1, limit=4
    $region2: #{tpu_custom_call.1} parent=1 // loop_pre_header
      _
    $region3: #{tpu_custom_call.1} parent=1 // loop_header
      %s20 = sphi 0, %s24
      %p21 = scmp.ge.s32.totalorder %s20, 4
      %s27 = sphi 0, %s39
      %s28 = sphi 0, %s35
      %s29 = sphi 0, %s27
      %s30 = sphi 0, %s28
      %s31 = sphi 0, %s29
      %s32 = sphi 0, %s30
      %s44 = sphi 0, %s46
      %s47 = sphi 0, %s44
      %s48 = sphi 0, %s47
      %s64 = sphi 0, %s48
      %s68 = sphi 0, %s68
      %s70 = sphi 0, %s68
      %s71 = sphi 0, %s70
      %s85 = sphi 0, %s71
      %s93 = sphi 0, %s95
      %s96 = sphi 0, %s93
      %s97 = sphi 0, %s96
      %s113 = sphi 0, %s97
      %s121 = sphi 0, %s123
      %s124 = sphi 0, %s121
      %s125 = sphi 0, %s124
      %s141 = sphi 0, %s125
    $region4: #{tpu_custom_call.1} parent=1 // loop_header_branch
      %23 = sbr.rel (%p21) target = $region8
    $region5: #{tpu_custom_call.1} parent=1 // loop_body
      %s25 = ssub.s32 %s20, 1
      %s26 = ssub.s32 %s20, 2
      %s33 = sadd.s32 1, %s28
      %p34 = scmp.ge.s32.totalorder %s33, 1
      %s35 = scalar_select %p34, 0, %s33
      %s36 = sadd.s32 1, %s27
      %s37 = scalar_select %p34, %s36, %s27
      %p38 = scmp.ge.s32.totalorder %s37, 2
      %s39 = scalar_select %p38, 0, %s37
      %s40 = ssub.s32 %s27, %s39
      %s41 = ssub.s32 %s28, %s35
      %s42 = sor.u32 %s40, %s41
      %p43 = scmp.eq.s32.totalorder %s42, 0
      %s45 = sadd.s32 %s44, 1
      %s46 = scalar_select %p43, %s44, %s45
      %p49 = pneg %p43
      %p50 = scmp.eq.s32.totalorder %s20, 1
      %p51 = por %p49, %p50
      %p52 = scmp.ne.s32.totalorder %s44, %s47
      %p53 = scmp.eq.s32.totalorder %s20, 0
      %p54 = por %p52, %p53
      %p55 = scmp.ne.s32.totalorder %s44, %s47
      %p56 = scmp.eq.s32.totalorder %s25, 1
      %p57 = por %p55, %p56
      %p58 = scmp.ne.s32.totalorder %s47, %s48
      %p59 = scmp.eq.s32.totalorder %s25, 0
      %p60 = por %p58, %p59
      %p61 = scmp.ne.s32.totalorder %s47, %s48
      %p62 = scmp.eq.s32.totalorder %s26, 1
      %p63 = por %p61, %p62
      %p65 = scmp.ne.s32.totalorder %s48, %s64
      %p66 = scmp.eq.s32.totalorder %s26, 0
      %p67 = por %p65, %p66
      %s69 = sadd.s32 %s68, 1
      %p72 = scmp.eq.s32.totalorder %s20, 1
      %p73 = scmp.ne.s32.totalorder %s68, %s70
      %p74 = scmp.eq.s32.totalorder %s20, 0
      %p75 = por %p73, %p74
      %p76 = scmp.ne.s32.totalorder %s68, %s70
      %p77 = scmp.eq.s32.totalorder %s25, 1
      %p78 = por %p76, %p77
      %p79 = scmp.ne.s32.totalorder %s70, %s71
      %p80 = scmp.eq.s32.totalorder %s25, 0
      %p81 = por %p79, %p80
      %p82 = scmp.ne.s32.totalorder %s70, %s71
      %p83 = scmp.eq.s32.totalorder %s26, 1
      %p84 = por %p82, %p83
      %p86 = scmp.ne.s32.totalorder %s71, %s85
      %p87 = scmp.eq.s32.totalorder %s26, 0
      %p88 = por %p86, %p87
      %s89 = ssub.s32 %s27, %s39
      %s90 = ssub.s32 %s28, %s35
      %s91 = sor.u32 %s89, %s90
      %p92 = scmp.eq.s32.totalorder %s91, 0
      %s94 = sadd.s32 %s93, 1
      %s95 = scalar_select %p92, %s93, %s94
      %p98 = pneg %p92
      %p99 = scmp.eq.s32.totalorder %s20, 1
      %p100 = por %p98, %p99
      %p101 = scmp.ne.s32.totalorder %s93, %s96
      %p102 = scmp.eq.s32.totalorder %s20, 0
      %p103 = por %p101, %p102
      %p104 = scmp.ne.s32.totalorder %s93, %s96
      %p105 = scmp.eq.s32.totalorder %s25, 1
      %p106 = por %p104, %p105
      %p107 = scmp.ne.s32.totalorder %s96, %s97
      %p108 = scmp.eq.s32.totalorder %s25, 0
      %p109 = por %p107, %p108
      %p110 = scmp.ne.s32.totalorder %s96, %s97
      %p111 = scmp.eq.s32.totalorder %s26, 1
      %p112 = por %p110, %p111
      %p114 = scmp.ne.s32.totalorder %s97, %s113
      %p115 = scmp.eq.s32.totalorder %s26, 0
      %p116 = por %p114, %p115
      %s117 = ssub.s32 %s27, %s39
      %s118 = ssub.s32 %s28, %s35
      %s119 = sor.u32 %s117, %s118
      %p120 = scmp.eq.s32.totalorder %s119, 0
      %s122 = sadd.s32 %s121, 1
      %s123 = scalar_select %p120, %s121, %s122
      %p126 = pneg %p120
      %p127 = scmp.eq.s32.totalorder %s20, 1
      %p128 = por %p126, %p127
      %p129 = scmp.ne.s32.totalorder %s121, %s124
      %p130 = scmp.eq.s32.totalorder %s20, 0
      %p131 = por %p129, %p130
      %p132 = scmp.ne.s32.totalorder %s121, %s124
      %p133 = scmp.eq.s32.totalorder %s25, 1
      %p134 = por %p132, %p133
      %p135 = scmp.ne.s32.totalorder %s124, %s125
      %p136 = scmp.eq.s32.totalorder %s25, 0
      %p137 = por %p135, %p136
      %p138 = scmp.ne.s32.totalorder %s124, %s125
      %p139 = scmp.eq.s32.totalorder %s26, 1
      %p140 = por %p138, %p139
      %p142 = scmp.ne.s32.totalorder %s125, %s141
      %p143 = scmp.eq.s32.totalorder %s26, 0
      %p144 = por %p142, %p143
      %p145 = scmp.le.s32.totalorder 1, %s20
      %p146 = scmp.lt.s32.totalorder %s20, 3
      %p147 = pnand %p145, %p146
      %p148 = pneg %p147
      // Predicated region
      $region9: #{tpu_custom_call.1} parent=5 // pred_check
        _
      $region10: #{tpu_custom_call.1} parent=5 // pred_check_branch
        %150 = sbr.rel (%p147) target = $region12
      $region11: #{tpu_custom_call.1} parent=5 // pred_region
        %s151 = ssub.s32 %s20, 1
        // Predicated region
        $region13: #{tpu_custom_call.1} parent=11 // pred_check
          %p152 = pneg %p81
        $region14: #{tpu_custom_call.1} parent=11 // pred_check_branch
          %154 = sbr.rel (%p152) target = $region16
        $region15: #{tpu_custom_call.1} parent=11 // pred_region
          %s156 = ssub.s32 1024, 1024
          %157 = vsyncadd [#allocation6], %s156
          %s158 = sshll.u32 [#allocation5], 4
          %s159 = int_to_ptr.vmem [resolvable:$true] %s158
          %164 = dma.hbm_to_vmem [thread:$0]  %s1, 1024, %s159, [#allocation6], 64, 64, 4
        $region16: #{tpu_custom_call.1} parent=11 // pred_fallthru
          _
      $region12: #{tpu_custom_call.1} parent=5 // pred_fallthru
        _
      %p165 = scmp.lt.s32.totalorder %s20, 2
      // Predicated region
      $region17: #{tpu_custom_call.1} parent=5 // pred_check
        %p166 = pneg %p165
      $region18: #{tpu_custom_call.1} parent=5 // pred_check_branch
        %168 = sbr.rel (%p166) target = $region20
      $region19: #{tpu_custom_call.1} parent=5 // pred_region
        // Predicated region
        $region21: #{tpu_custom_call.1} parent=19 // pred_check
          %p169 = pneg %p54
        $region22: #{tpu_custom_call.1} parent=19 // pred_check_branch
          %171 = sbr.rel (%p169) target = $region24
        $region23: #{tpu_custom_call.1} parent=19 // pred_region
          %s172 = sand.u32 %s44, 1
          %s173 = scalar_lea.sflag [#allocation3], %s172
          %s174 = sand.u32 %s44, 1
          %s175 = smul.addr %s174, 128
          %s176 = scalar_lea.vmem [#allocation2], %s175
          %s177 = smul.u32 32, %s28
          %s179 = ssub.s32 2048, 2048
          %180 = vsyncadd %s173, %s179
          %s181 = smul.addr %s27, 32
          %s182 = sadd.s32 %s177, %s181
          %s183 = smul.addr %s182, 64
          %s184 = scalar_lea.hbm %s0, %s183
          %s185 = sshll.u32 %s176, 4
          %s186 = int_to_ptr.vmem [resolvable:$true] %s185
          %191 = dma.hbm_to_vmem [thread:$0]  %s184, 2048, %s186, %s173, 64, 64, 4
        $region24: #{tpu_custom_call.1} parent=19 // pred_fallthru
          _
      $region20: #{tpu_custom_call.1} parent=5 // pred_fallthru
        _
      %p192 = scmp.le.s32.totalorder 1, %s20
      %p193 = scmp.lt.s32.totalorder %s20, 3
      %p194 = pnand %p192, %p193
      %p195 = pneg %p194
      // Predicated region
      $region25: #{tpu_custom_call.1} parent=5 // pred_check
        _
      $region26: #{tpu_custom_call.1} parent=5 // pred_check_branch
        %197 = sbr.rel (%p194) target = $region28
      $region27: #{tpu_custom_call.1} parent=5 // pred_region
        %s198 = ssub.s32 %s20, 1
        %s199 = sand.u32 %s47, 1
        %s200 = scalar_lea.sflag [#allocation3], %s199
        %s201 = sand.u32 %s47, 1
        %s202 = smul.addr %s201, 128
        %s203 = scalar_lea.vmem [#allocation2], %s202
        // Predicated region
        $region29: #{tpu_custom_call.1} parent=27 // pred_check
          %p204 = pneg %p60
        $region30: #{tpu_custom_call.1} parent=27 // pred_check_branch
          %206 = sbr.rel (%p204) target = $region32
        $region31: #{tpu_custom_call.1} parent=27 // pred_region
          %207 = dma.done %s200, 2048
        $region32: #{tpu_custom_call.1} parent=27 // pred_fallthru
          _
        // Predicated region
        $region33: #{tpu_custom_call.1} parent=27 // pred_check
          %p208 = pneg %p81
        $region34: #{tpu_custom_call.1} parent=27 // pred_check_branch
          %210 = sbr.rel (%p208) target = $region36
        $region35: #{tpu_custom_call.1} parent=27 // pred_region
          %211 = dma.done [#allocation6], 1024
        $region36: #{tpu_custom_call.1} parent=27 // pred_fallthru
          _
        %s212 = sand.u32 %s47, 1
        %s213 = scalar_lea.sflag [#allocation3], %s212
        %s214 = sand.u32 %s47, 1
        %s215 = smul.addr %s214, 128
        %s216 = scalar_lea.vmem [#allocation2], %s215
        %p217 = pneg %p60
        %p218 = pneg %p57
        %p219 = pneg %p81
        %p220 = pneg %p78
        %p221 = pneg %p109
        %p222 = pneg %p106
        %s223 = sand.u32 %s96, 1
        %s224 = scalar_lea.sflag [#allocation4], %s223
        %s225 = sand.u32 %s96, 1
        %s226 = smul.addr %s225, 256
        %s227 = scalar_lea.vmem [#allocation7], %s226
        %p228 = pneg %p137
        %p229 = pneg %p134
        %s230 = sand.u32 %s124, 1
        %s231 = scalar_lea.sflag [#allocation9], %s230
        %s232 = sand.u32 %s124, 1
        %s233 = smul.addr %s232, 8
        %s234 = scalar_lea.vmem [#allocation8], %s233
        %s235 = smul.u32 32, %s30
        %s236 = smul.u32 32, %s30
        %v238 = vld [vmem:[%s203] sm:$0xf]
        %v239 = vld [vmem:[%s203 + $0x4] sm:$0xf]
        %v240 = vld [vmem:[%s203 + $0x8] sm:$0xf]
        %v241 = vld [vmem:[%s203 + $0xc] sm:$0xf]
        %v242 = vld [vmem:[%s203 + $0x10] sm:$0xf]
        %v243 = vld [vmem:[%s203 + $0x14] sm:$0xf]
        %v244 = vld [vmem:[%s203 + $0x18] sm:$0xf]
        %v245 = vld [vmem:[%s203 + $0x1c] sm:$0xf]
        %v246 = vld [vmem:[%s203 + $0x20] sm:$0xf]
        %v247 = vld [vmem:[%s203 + $0x24] sm:$0xf]
        %v248 = vld [vmem:[%s203 + $0x28] sm:$0xf]
        %v249 = vld [vmem:[%s203 + $0x2c] sm:$0xf]
        %v250 = vld [vmem:[%s203 + $0x30] sm:$0xf]
        %v251 = vld [vmem:[%s203 + $0x34] sm:$0xf]
        %v252 = vld [vmem:[%s203 + $0x38] sm:$0xf]
        %v253 = vld [vmem:[%s203 + $0x3c] sm:$0xf]
        %v254 = vld [vmem:[%s203 + $0x40] sm:$0xf]
        %v255 = vld [vmem:[%s203 + $0x44] sm:$0xf]
        %v256 = vld [vmem:[%s203 + $0x48] sm:$0xf]
        %v257 = vld [vmem:[%s203 + $0x4c] sm:$0xf]
        %v258 = vld [vmem:[%s203 + $0x50] sm:$0xf]
        %v259 = vld [vmem:[%s203 + $0x54] sm:$0xf]
        %v260 = vld [vmem:[%s203 + $0x58] sm:$0xf]
        %v261 = vld [vmem:[%s203 + $0x5c] sm:$0xf]
        %v262 = vld [vmem:[%s203 + $0x60] sm:$0xf]
        %v263 = vld [vmem:[%s203 + $0x64] sm:$0xf]
        %v264 = vld [vmem:[%s203 + $0x68] sm:$0xf]
        %v265 = vld [vmem:[%s203 + $0x6c] sm:$0xf]
        %v266 = vld [vmem:[%s203 + $0x70] sm:$0xf]
        %v267 = vld [vmem:[%s203 + $0x74] sm:$0xf]
        %v268 = vld [vmem:[%s203 + $0x78] sm:$0xf]
        %v269 = vld [vmem:[%s203 + $0x7c] sm:$0xf]
        %v270 = vld [vmem:[#allocation5] sm:$0xf]
        %v271 = vld [vmem:[#allocation5 + $0x4] sm:$0xf]
        %v272 = vld [vmem:[#allocation5 + $0x8] sm:$0xf]
        %v273 = vld [vmem:[#allocation5 + $0xc] sm:$0xf]
        %v274 = vld [vmem:[#allocation5 + $0x10] sm:$0xf]
        %v275 = vld [vmem:[#allocation5 + $0x14] sm:$0xf]
        %v276 = vld [vmem:[#allocation5 + $0x18] sm:$0xf]
        %v277 = vld [vmem:[#allocation5 + $0x1c] sm:$0xf]
        %v278 = vld [vmem:[#allocation5 + $0x20] sm:$0xf]
        %v279 = vld [vmem:[#allocation5 + $0x24] sm:$0xf]
        %v280 = vld [vmem:[#allocation5 + $0x28] sm:$0xf]
        %v281 = vld [vmem:[#allocation5 + $0x2c] sm:$0xf]
        %v282 = vld [vmem:[#allocation5 + $0x30] sm:$0xf]
        %v283 = vld [vmem:[#allocation5 + $0x34] sm:$0xf]
        %v284 = vld [vmem:[#allocation5 + $0x38] sm:$0xf]
        %v285 = vld [vmem:[#allocation5 + $0x3c] sm:$0xf]
        %v318 = vunpack.c.l.b16 %v238
        %v319 = vunpack.c.l.b16 %v239
        %v320 = vunpack.c.l.b16 %v240
        %v321 = vunpack.c.l.b16 %v241
        %v322 = vunpack.c.l.b16 %v242
        %v323 = vunpack.c.l.b16 %v243
        %v324 = vunpack.c.l.b16 %v244
        %v325 = vunpack.c.l.b16 %v245
        %v326 = vunpack.c.l.b16 %v246
        %v327 = vunpack.c.l.b16 %v247
        %v328 = vunpack.c.l.b16 %v248
        %v329 = vunpack.c.l.b16 %v249
        %v330 = vunpack.c.l.b16 %v250
        %v331 = vunpack.c.l.b16 %v251
        %v332 = vunpack.c.l.b16 %v252
        %v333 = vunpack.c.l.b16 %v253
        %v334 = vunpack.c.l.b16 %v254
        %v335 = vunpack.c.l.b16 %v255
        %v336 = vunpack.c.l.b16 %v256
        %v337 = vunpack.c.l.b16 %v257
        %v338 = vunpack.c.l.b16 %v258
        %v339 = vunpack.c.l.b16 %v259
        %v340 = vunpack.c.l.b16 %v260
        %v341 = vunpack.c.l.b16 %v261
        %v342 = vunpack.c.l.b16 %v262
        %v343 = vunpack.c.l.b16 %v263
        %v344 = vunpack.c.l.b16 %v264
        %v345 = vunpack.c.l.b16 %v265
        %v346 = vunpack.c.l.b16 %v266
        %v347 = vunpack.c.l.b16 %v267
        %v348 = vunpack.c.l.b16 %v268
        %v349 = vunpack.c.l.b16 %v269
        %v350 = vpack.c.b16 %v319, %v318
        %v351 = vpack.c.b16 %v321, %v320
        %v352 = vpack.c.b16 %v323, %v322
        %v353 = vpack.c.b16 %v325, %v324
        %v354 = vpack.c.b16 %v327, %v326
        %v355 = vpack.c.b16 %v329, %v328
        %v356 = vpack.c.b16 %v331, %v330
        %v357 = vpack.c.b16 %v333, %v332
        %v358 = vpack.c.b16 %v335, %v334
        %v359 = vpack.c.b16 %v337, %v336
        %v360 = vpack.c.b16 %v339, %v338
        %v361 = vpack.c.b16 %v341, %v340
        %v362 = vpack.c.b16 %v343, %v342
        %v363 = vpack.c.b16 %v345, %v344
        %v364 = vpack.c.b16 %v347, %v346
        %v365 = vpack.c.b16 %v349, %v348
        %v398 = vunpack.c.l.b16 %v270
        %v399 = vunpack.c.l.b16 %v271
        %v400 = vunpack.c.l.b16 %v272
        %v401 = vunpack.c.l.b16 %v273
        %v402 = vunpack.c.l.b16 %v274
        %v403 = vunpack.c.l.b16 %v275
        %v404 = vunpack.c.l.b16 %v276
        %v405 = vunpack.c.l.b16 %v277
        %v406 = vunpack.c.l.b16 %v278
        %v407 = vunpack.c.l.b16 %v279
        %v408 = vunpack.c.l.b16 %v280
        %v409 = vunpack.c.l.b16 %v281
        %v410 = vunpack.c.l.b16 %v282
        %v411 = vunpack.c.l.b16 %v283
        %v412 = vunpack.c.l.b16 %v284
        %v413 = vunpack.c.l.b16 %v285
        %v414 = vpack.c.b16 %v399, %v398
        %v415 = vpack.c.b16 %v401, %v400
        %v416 = vpack.c.b16 %v403, %v402
        %v417 = vpack.c.b16 %v405, %v404
        %v418 = vpack.c.b16 %v407, %v406
        %v419 = vpack.c.b16 %v409, %v408
        %v420 = vpack.c.b16 %v411, %v410
        %v421 = vpack.c.b16 %v413, %v412
        %430 = vmatprep.subr.bf16.mxu0 0
        %431 = vmatpush1.bf16.msra.mxu0 %v414
        %432 = vmatprep.subr.bf16.mxu0 0
        %433 = vmatpush1.bf16.msra.mxu0 %v415
        %434 = vmatprep.subr.bf16.mxu0 0
        %435 = vmatpush1.bf16.msra.mxu0 %v416
        %436 = vmatprep.subr.bf16.mxu0 0
        %437 = vmatpush1.bf16.msra.mxu0 %v417
        %438 = vmatprep.subr.bf16.mxu0 0
        %439 = vmatpush1.bf16.msra.mxu0 %v418
        %440 = vmatprep.subr.bf16.mxu0 0
        %441 = vmatpush1.bf16.msra.mxu0 %v419
        %442 = vmatprep.subr.bf16.mxu0 0
        %443 = vmatpush1.bf16.msra.mxu0 %v420
        %444 = vmatprep.subr.bf16.mxu0 0
        %445 = vmatpush1.bf16.msra.mxu0 %v421
        %446 = vmatprep.subr.bf16.mxu0 0
        %447 = vmatpush1.bf16.msra.mxu0 0
        %448 = vmatprep.subr.bf16.mxu0 0
        %449 = vmatpush1.bf16.msra.mxu0 0
        %450 = vmatprep.subr.bf16.mxu0 0
        %451 = vmatpush1.bf16.msra.mxu0 0
        %452 = vmatprep.subr.bf16.mxu0 0
        %453 = vmatpush1.bf16.msra.mxu0 0
        %454 = vmatprep.subr.bf16.mxu0 0
        %455 = vmatpush1.bf16.msra.mxu0 0
        %456 = vmatprep.subr.bf16.mxu0 0
        %457 = vmatpush1.bf16.msra.mxu0 0
        %458 = vmatprep.subr.bf16.mxu0 0
        %459 = vmatpush1.bf16.msra.mxu0 0
        %460 = vmatprep.subr.bf16.mxu0 0
        %461 = vmatpush1.bf16.msra.mxu0 0
        %462 = vmatprep.mubr.bf16.mxu0 0
        %463 = vmatmul.mubr.bf16.gmra.mrb[0].mxu0 %v350
        %v464 = vpop.f32.mrb[0].mxu0
        %v465 = vadd.f32 0.0, %v464
        %v466 = vpop.f32.mrb[0].mxu0
        %v467 = vpop.f32.mrb[0].mxu0
        %v468 = vadd.f32 0.0, %v467
        %v469 = vpop.f32.mrb[0].mxu0
        %470 = vmatprep.mubr.bf16.mxu0 0
        %471 = vmatmul.mubr.bf16.gmra.mrb[0].mxu0 %v351
        %v472 = vpop.f32.mrb[0].mxu0
        %v473 = vadd.f32 0.0, %v472
        %v474 = vpop.f32.mrb[0].mxu0
        %v475 = vpop.f32.mrb[0].mxu0
        %v476 = vadd.f32 0.0, %v475
        %v477 = vpop.f32.mrb[0].mxu0
        %478 = vmatprep.mubr.bf16.mxu0 0
        %479 = vmatmul.mubr.bf16.gmra.mrb[0].mxu0 %v352
        %v480 = vpop.f32.mrb[0].mxu0
        %v481 = vadd.f32 0.0, %v480
        %v482 = vpop.f32.mrb[0].mxu0
        %v483 = vpop.f32.mrb[0].mxu0
        %v484 = vadd.f32 0.0, %v483
        %v485 = vpop.f32.mrb[0].mxu0
        %486 = vmatprep.mubr.bf16.mxu0 0
        %487 = vmatmul.mubr.bf16.gmra.mrb[0].mxu0 %v353
        %v488 = vpop.f32.mrb[0].mxu0
        %v489 = vadd.f32 0.0, %v488
        %v490 = vpop.f32.mrb[0].mxu0
        %v491 = vpop.f32.mrb[0].mxu0
        %v492 = vadd.f32 0.0, %v491
        %v493 = vpop.f32.mrb[0].mxu0
        %494 = vmatprep.mubr.bf16.mxu0 0
        %495 = vmatmul.mubr.bf16.gmra.mrb[0].mxu0 %v354
        %v496 = vpop.f32.mrb[0].mxu0
        %v497 = vadd.f32 0.0, %v496
        %v498 = vpop.f32.mrb[0].mxu0
        %v499 = vpop.f32.mrb[0].mxu0
        %v500 = vadd.f32 0.0, %v499
        %v501 = vpop.f32.mrb[0].mxu0
        %502 = vmatprep.mubr.bf16.mxu0 0
        %503 = vmatmul.mubr.bf16.gmra.mrb[0].mxu0 %v355
        %v504 = vpop.f32.mrb[0].mxu0
        %v505 = vadd.f32 0.0, %v504
        %v506 = vpop.f32.mrb[0].mxu0
        %v507 = vpop.f32.mrb[0].mxu0
        %v508 = vadd.f32 0.0, %v507
        %v509 = vpop.f32.mrb[0].mxu0
        %510 = vmatprep.mubr.bf16.mxu0 0
        %511 = vmatmul.mubr.bf16.gmra.mrb[0].mxu0 %v356
        %v512 = vpop.f32.mrb[0].mxu0
        %v513 = vadd.f32 0.0, %v512
        %v514 = vpop.f32.mrb[0].mxu0
        %v515 = vpop.f32.mrb[0].mxu0
        %v516 = vadd.f32 0.0, %v515
        %v517 = vpop.f32.mrb[0].mxu0
        %518 = vmatprep.mubr.bf16.mxu0 0
        %519 = vmatmul.mubr.bf16.gmra.mrb[0].mxu0 %v357
        %v520 = vpop.f32.mrb[0].mxu0
        %v521 = vadd.f32 0.0, %v520
        %v522 = vpop.f32.mrb[0].mxu0
        %v523 = vpop.f32.mrb[0].mxu0
        %v524 = vadd.f32 0.0, %v523
        %v525 = vpop.f32.mrb[0].mxu0
        %526 = vmatprep.mubr.bf16.mxu0 0
        %527 = vmatmul.mubr.bf16.gmra.mrb[0].mxu0 %v358
        %v528 = vpop.f32.mrb[0].mxu0
        %v529 = vadd.f32 0.0, %v528
        %v530 = vpop.f32.mrb[0].mxu0
        %v531 = vpop.f32.mrb[0].mxu0
        %v532 = vadd.f32 0.0, %v531
        %v533 = vpop.f32.mrb[0].mxu0
        %534 = vmatprep.mubr.bf16.mxu0 0
        %535 = vmatmul.mubr.bf16.gmra.mrb[0].mxu0 %v359
        %v536 = vpop.f32.mrb[0].mxu0
        %v537 = vadd.f32 0.0, %v536
        %v538 = vpop.f32.mrb[0].mxu0
        %v539 = vpop.f32.mrb[0].mxu0
        %v540 = vadd.f32 0.0, %v539
        %v541 = vpop.f32.mrb[0].mxu0
        %542 = vmatprep.mubr.bf16.mxu0 0
        %543 = vmatmul.mubr.bf16.gmra.mrb[0].mxu0 %v360
        %v544 = vpop.f32.mrb[0].mxu0
        %v545 = vadd.f32 0.0, %v544
        %v546 = vpop.f32.mrb[0].mxu0
        %v547 = vpop.f32.mrb[0].mxu0
        %v548 = vadd.f32 0.0, %v547
        %v549 = vpop.f32.mrb[0].mxu0
        %550 = vmatprep.mubr.bf16.mxu0 0
        %551 = vmatmul.mubr.bf16.gmra.mrb[0].mxu0 %v361
        %v552 = vpop.f32.mrb[0].mxu0
        %v553 = vadd.f32 0.0, %v552
        %v554 = vpop.f32.mrb[0].mxu0
        %v555 = vpop.f32.mrb[0].mxu0
        %v556 = vadd.f32 0.0, %v555
        %v557 = vpop.f32.mrb[0].mxu0
        %558 = vmatprep.mubr.bf16.mxu0 0
        %559 = vmatmul.mubr.bf16.gmra.mrb[0].mxu0 %v362
        %v560 = vpop.f32.mrb[0].mxu0
        %v561 = vadd.f32 0.0, %v560
        %v562 = vpop.f32.mrb[0].mxu0
        %v563 = vpop.f32.mrb[0].mxu0
        %v564 = vadd.f32 0.0, %v563
        %v565 = vpop.f32.mrb[0].mxu0
        %566 = vmatprep.mubr.bf16.mxu0 0
        %567 = vmatmul.mubr.bf16.gmra.mrb[0].mxu0 %v363
        %v568 = vpop.f32.mrb[0].mxu0
        %v569 = vadd.f32 0.0, %v568
        %v570 = vpop.f32.mrb[0].mxu0
        %v571 = vpop.f32.mrb[0].mxu0
        %v572 = vadd.f32 0.0, %v571
        %v573 = vpop.f32.mrb[0].mxu0
        %574 = vmatprep.mubr.bf16.mxu0 0
        %575 = vmatmul.mubr.bf16.gmra.mrb[0].mxu0 %v364
        %v576 = vpop.f32.mrb[0].mxu0
        %v577 = vadd.f32 0.0, %v576
        %v578 = vpop.f32.mrb[0].mxu0
        %v579 = vpop.f32.mrb[0].mxu0
        %v580 = vadd.f32 0.0, %v579
        %v581 = vpop.f32.mrb[0].mxu0
        %582 = vmatprep.mubr.bf16.mxu0 0
        %583 = vmatmul.mubr.bf16.gmra.mrb[0].mxu0 %v365
        %v584 = vpop.f32.mrb[0].mxu0
        %v585 = vadd.f32 0.0, %v584
        %v586 = vpop.f32.mrb[0].mxu0
        %v587 = vpop.f32.mrb[0].mxu0
        %v588 = vadd.f32 0.0, %v587
        %v589 = vpop.f32.mrb[0].mxu0
        %590 = vdwg.mxu0
        %591 = vst [vmem:[%s227] sm:$0xff] %v465
        %592 = vst [vmem:[%s227 + $0x8] sm:$0xff] %v468
        %593 = vst [vmem:[%s227 + $0x10] sm:$0xff] %v473
        %594 = vst [vmem:[%s227 + $0x18] sm:$0xff] %v476
        %595 = vst [vmem:[%s227 + $0x20] sm:$0xff] %v481
        %596 = vst [vmem:[%s227 + $0x28] sm:$0xff] %v484
        %597 = vst [vmem:[%s227 + $0x30] sm:$0xff] %v489
        %598 = vst [vmem:[%s227 + $0x38] sm:$0xff] %v492
        %599 = vst [vmem:[%s227 + $0x40] sm:$0xff] %v497
        %600 = vst [vmem:[%s227 + $0x48] sm:$0xff] %v500
        %601 = vst [vmem:[%s227 + $0x50] sm:$0xff] %v505
        %602 = vst [vmem:[%s227 + $0x58] sm:$0xff] %v508
        %603 = vst [vmem:[%s227 + $0x60] sm:$0xff] %v513
        %604 = vst [vmem:[%s227 + $0x68] sm:$0xff] %v516
        %605 = vst [vmem:[%s227 + $0x70] sm:$0xff] %v521
        %606 = vst [vmem:[%s227 + $0x78] sm:$0xff] %v524
        %607 = vst [vmem:[%s227 + $0x80] sm:$0xff] %v529
        %608 = vst [vmem:[%s227 + $0x88] sm:$0xff] %v532
        %609 = vst [vmem:[%s227 + $0x90] sm:$0xff] %v537
        %610 = vst [vmem:[%s227 + $0x98] sm:$0xff] %v540
        %611 = vst [vmem:[%s227 + $0xa0] sm:$0xff] %v545
        %612 = vst [vmem:[%s227 + $0xa8] sm:$0xff] %v548
        %613 = vst [vmem:[%s227 + $0xb0] sm:$0xff] %v553
        %614 = vst [vmem:[%s227 + $0xb8] sm:$0xff] %v556
        %615 = vst [vmem:[%s227 + $0xc0] sm:$0xff] %v561
        %616 = vst [vmem:[%s227 + $0xc8] sm:$0xff] %v564
        %617 = vst [vmem:[%s227 + $0xd0] sm:$0xff] %v569
        %618 = vst [vmem:[%s227 + $0xd8] sm:$0xff] %v572
        %619 = vst [vmem:[%s227 + $0xe0] sm:$0xff] %v577
        %620 = vst [vmem:[%s227 + $0xe8] sm:$0xff] %v580
        %621 = vst [vmem:[%s227 + $0xf0] sm:$0xff] %v585
        %622 = vst [vmem:[%s227 + $0xf8] sm:$0xff] %v588
        %v623 = vadd.f32 %v465, %v468
        %v624 = vadd.f32 %v623, %v473
        %v625 = vadd.f32 %v624, %v476
        %v626 = vadd.f32 %v625, %v481
        %v627 = vadd.f32 %v626, %v484
        %v628 = vadd.f32 %v627, %v489
        %v629 = vadd.f32 %v628, %v492
        %v630 = vadd.f32 %v629, %v497
        %v631 = vadd.f32 %v630, %v500
        %v632 = vadd.f32 %v631, %v505
        %v633 = vadd.f32 %v632, %v508
        %v634 = vadd.f32 %v633, %v513
        %v635 = vadd.f32 %v634, %v516
        %v636 = vadd.f32 %v635, %v521
        %v637 = vadd.f32 %v636, %v524
        %v638 = vadd.f32 %v637, %v529
        %v639 = vadd.f32 %v638, %v532
        %v640 = vadd.f32 %v639, %v537
        %v641 = vadd.f32 %v640, %v540
        %v642 = vadd.f32 %v641, %v545
        %v643 = vadd.f32 %v642, %v548
        %v644 = vadd.f32 %v643, %v553
        %v645 = vadd.f32 %v644, %v556
        %v646 = vadd.f32 %v645, %v561
        %v647 = vadd.f32 %v646, %v564
        %v648 = vadd.f32 %v647, %v569
        %v649 = vadd.f32 %v648, %v572
        %v650 = vadd.f32 %v649, %v577
        %v651 = vadd.f32 %v650, %v580
        %v652 = vadd.f32 %v651, %v585
        %v653 = vadd.f32 %v652, %v588
        %v654 = vrot.slane %v653, 4
        %v655 = vadd.f32 %v653, %v654
        %v656 = vrot.slane %v655, 2
        %v657 = vadd.f32 %v655, %v656
        %v658 = vrot.slane %v657, 1
        %v659 = vadd.f32 %v657, %v658
        %v660 = vmul.f32 %v465, %v465
        %v661 = vmul.f32 %v468, %v468
        %v662 = vmul.f32 %v473, %v473
        %v663 = vmul.f32 %v476, %v476
        %v664 = vmul.f32 %v481, %v481
        %v665 = vmul.f32 %v484, %v484
        %v666 = vmul.f32 %v489, %v489
        %v667 = vmul.f32 %v492, %v492
        %v668 = vmul.f32 %v497, %v497
        %v669 = vmul.f32 %v500, %v500
        %v670 = vmul.f32 %v505, %v505
        %v671 = vmul.f32 %v508, %v508
        %v672 = vmul.f32 %v513, %v513
        %v673 = vmul.f32 %v516, %v516
        %v674 = vmul.f32 %v521, %v521
        %v675 = vmul.f32 %v524, %v524
        %v676 = vmul.f32 %v529, %v529
        %v677 = vmul.f32 %v532, %v532
        %v678 = vmul.f32 %v537, %v537
        %v679 = vmul.f32 %v540, %v540
        %v680 = vmul.f32 %v545, %v545
        %v681 = vmul.f32 %v548, %v548
        %v682 = vmul.f32 %v553, %v553
        %v683 = vmul.f32 %v556, %v556
        %v684 = vmul.f32 %v561, %v561
        %v685 = vmul.f32 %v564, %v564
        %v686 = vmul.f32 %v569, %v569
        %v687 = vmul.f32 %v572, %v572
        %v688 = vmul.f32 %v577, %v577
        %v689 = vmul.f32 %v580, %v580
        %v690 = vmul.f32 %v585, %v585
        %v691 = vmul.f32 %v588, %v588
        %v692 = vadd.f32 %v660, %v661
        %v693 = vadd.f32 %v692, %v662
        %v694 = vadd.f32 %v693, %v663
        %v695 = vadd.f32 %v694, %v664
        %v696 = vadd.f32 %v695, %v665
        %v697 = vadd.f32 %v696, %v666
        %v698 = vadd.f32 %v697, %v667
        %v699 = vadd.f32 %v698, %v668
        %v700 = vadd.f32 %v699, %v669
        %v701 = vadd.f32 %v700, %v670
        %v702 = vadd.f32 %v701, %v671
        %v703 = vadd.f32 %v702, %v672
        %v704 = vadd.f32 %v703, %v673
        %v705 = vadd.f32 %v704, %v674
        %v706 = vadd.f32 %v705, %v675
        %v707 = vadd.f32 %v706, %v676
        %v708 = vadd.f32 %v707, %v677
        %v709 = vadd.f32 %v708, %v678
        %v710 = vadd.f32 %v709, %v679
        %v711 = vadd.f32 %v710, %v680
        %v712 = vadd.f32 %v711, %v681
        %v713 = vadd.f32 %v712, %v682
        %v714 = vadd.f32 %v713, %v683
        %v715 = vadd.f32 %v714, %v684
        %v716 = vadd.f32 %v715, %v685
        %v717 = vadd.f32 %v716, %v686
        %v718 = vadd.f32 %v717, %v687
        %v719 = vadd.f32 %v718, %v688
        %v720 = vadd.f32 %v719, %v689
        %v721 = vadd.f32 %v720, %v690
        %v722 = vadd.f32 %v721, %v691
        %v723 = vrot.slane %v722, 4
        %v724 = vadd.f32 %v722, %v723
        %v725 = vrot.slane %v724, 2
        %v726 = vadd.f32 %v724, %v725
        %v727 = vrot.slane %v726, 1
        %v728 = vadd.f32 %v726, %v727
        %vm729 = vcmask 1040384
        %v730 = vsel %vm729, %v659, %v728
        %vm731 = vcmask 1041408
        %v732 = vsel %vm731, %v730, 0.0
        %733 = vst [vmem:[%s234] sm:$0xff] %v732
        %s734 = sand.u32 %s96, 1
        %s735 = scalar_lea.sflag [#allocation4], %s734
        %s736 = sand.u32 %s96, 1
        %s737 = smul.addr %s736, 256
        %s738 = scalar_lea.vmem [#allocation7], %s737
        %s739 = sand.u32 %s124, 1
        %s740 = scalar_lea.sflag [#allocation9], %s739
        %s741 = sand.u32 %s124, 1
        %s742 = smul.addr %s741, 8
        %s743 = scalar_lea.vmem [#allocation8], %s742
        // Predicated region
        $region37: #{tpu_custom_call.1} parent=27 // pred_check
          %p744 = pneg %p106
        $region38: #{tpu_custom_call.1} parent=27 // pred_check_branch
          %746 = sbr.rel (%p744) target = $region40
        $region39: #{tpu_custom_call.1} parent=27 // pred_region
          %s747 = smul.u32 32, %s30
          %s749 = ssub.s32 4096, 4096
          %750 = vsyncadd %s735, %s749
          %s751 = smul.addr %s29, 32
          %s752 = sadd.s32 %s747, %s751
          %s753 = smul.addr %s752, 128
          %s754 = scalar_lea.hbm %s2, %s753
          %s755 = sshll.u32 %s738, 4
          %s756 = int_to_ptr.vmem [resolvable:$true] %s755
          %761 = dma.vmem_to_hbm [thread:$0]  %s756, 4096, %s754, %s735, 128, 128, 8
        $region40: #{tpu_custom_call.1} parent=27 // pred_fallthru
          _
        // Predicated region
        $region41: #{tpu_custom_call.1} parent=27 // pred_check
          %p762 = pneg %p134
        $region42: #{tpu_custom_call.1} parent=27 // pred_check_branch
          %764 = sbr.rel (%p762) target = $region44
        $region43: #{tpu_custom_call.1} parent=27 // pred_region
          %s766 = ssub.s32 128, 128
          %767 = vsyncadd %s740, %s766
          %s768 = sadd.s32 %s30, %s29
          %s769 = smul.addr %s768, 128
          %s770 = scalar_lea.hbm %s3, %s769
          %s772 = sshll.u32 %s743, 4
          %s773 = int_to_ptr.vmem [resolvable:$true] %s772
          %775 = dma.vmem_to_hbm [thread:$0]  %s773, 128, %s770, %s740
        $region44: #{tpu_custom_call.1} parent=27 // pred_fallthru
          _
      $region28: #{tpu_custom_call.1} parent=5 // pred_fallthru
        _
      %p776 = scmp.le.s32.totalorder 2, %s20
      // Predicated region
      $region45: #{tpu_custom_call.1} parent=5 // pred_check
        %p777 = pneg %p776
      $region46: #{tpu_custom_call.1} parent=5 // pred_check_branch
        %779 = sbr.rel (%p777) target = $region48
      $region47: #{tpu_custom_call.1} parent=5 // pred_region
        %s780 = ssub.s32 %s20, 2
        // Predicated region
        $region49: #{tpu_custom_call.1} parent=47 // pred_check
          %p781 = pneg %p112
        $region50: #{tpu_custom_call.1} parent=47 // pred_check_branch
          %783 = sbr.rel (%p781) target = $region52
        $region51: #{tpu_custom_call.1} parent=47 // pred_region
          %s784 = sand.u32 %s97, 1
          %s785 = scalar_lea.sflag [#allocation4], %s784
          %s786 = sand.u32 %s97, 1
          %s787 = smul.addr %s786, 256
          %s788 = scalar_lea.vmem [#allocation7], %s787
          %789 = dma.done %s785, 4096
        $region52: #{tpu_custom_call.1} parent=47 // pred_fallthru
          _
        // Predicated region
        $region53: #{tpu_custom_call.1} parent=47 // pred_check
          %p790 = pneg %p140
        $region54: #{tpu_custom_call.1} parent=47 // pred_check_branch
          %792 = sbr.rel (%p790) target = $region56
        $region55: #{tpu_custom_call.1} parent=47 // pred_region
          %s793 = sand.u32 %s125, 1
          %s794 = scalar_lea.sflag [#allocation9], %s793
          %s795 = sand.u32 %s125, 1
          %s796 = smul.addr %s795, 8
          %s797 = scalar_lea.vmem [#allocation8], %s796
          %798 = dma.done %s794, 128
        $region56: #{tpu_custom_call.1} parent=47 // pred_fallthru
          _
      $region48: #{tpu_custom_call.1} parent=5 // pred_fallthru
        _
    $region6: #{tpu_custom_call.1} parent=1 // loop_footer
      %s24 = sadd.s32 1, %s20
    $region7: #{tpu_custom_call.1} parent=1 // loop_footer_branch
      %19 = sbr.rel target = $region3
    $region8: #{tpu_custom_call.1} parent=1 // loop_exit
      _
    %799 = vsyncpa [#allocation3], 1
    %s800 = scalar_lea.sflag [#allocation3], 1
    %801 = vsyncpa %s800, 1
    %802 = vsyncpa [#allocation6], 1
    %803 = vsyncpa [#allocation4], 1
    %s804 = scalar_lea.sflag [#allocation4], 1
    %805 = vsyncpa %s804, 1
    %806 = vsyncpa [#allocation9], 1
    %s807 = scalar_lea.sflag [#allocation9], 1
    %808 = vsyncpa %s807, 1

</llo_original>
